<compile_context>
chip_gen: v5e
topology: v5e:2x2
jax: 0.10.0
libtpu: 0.0.40
codegen_flags: <defaults>
</compile_context>

<pallas_src>
import jax
import jax.numpy as jnp
from jax.experimental import pallas as pl
from jax.experimental.pallas import tpu as pltpu

_MIB = 2 ** 20


def _round_up(x, m):
    return (x + m - 1) // m * m


def _vmem_capacity_bytes():
    """Physical VMEM per TensorCore; falls back to the v7x-safe 64 MiB."""
    try:
        return int(pltpu.get_tpu_info().vmem_capacity_bytes)
    except Exception:
        return 64 * _MIB


def _vmem_ceiling(capacity):
    # v5e / v6e (128 MiB physical): allow up to ~100 MiB scoped VMEM.
    # v7x (64 MiB per TC): stay at ~48 MiB to leave Mosaic scratch headroom.
    return 100 * _MIB if capacity >= 96 * _MIB else 48 * _MIB


def _vmem_footprint(tb, th, d_in_p, d_out_p, isz_x, isz_w, isz_out, with_acc):
    """Conservative VMEM estimate: BlockSpec double-buffers every in/out block;
    (1, N) bias blocks occupy a sublane-padded (8, N) tile per buffer."""
    xo = 2 * tb * d_in_p * isz_x + 2 * tb * d_out_p * isz_out
    w = 2 * (d_in_p * th + th * d_out_p) * isz_w
    b = 2 * 8 * (th + d_out_p) * 4
    acc = tb * d_out_p * 4 if with_acc else 0
    return xo + w + b + acc


# ----------------------------- kernels -------------------------------------


def _mlp_kernel_single(x_ref, w1_ref, b1_ref, w2_ref, b2_ref, out_ref):
    """Whole hidden dim resident: fused fc1 -> ReLU -> fc2 in one pass."""
    h = jnp.dot(x_ref[...], w1_ref[...], preferred_element_type=jnp.float32)
    h = jnp.maximum(h + b1_ref[...], 0.0)                     # f32 epilogue
    y = jnp.dot(h.astype(w2_ref.dtype), w2_ref[...],
                preferred_element_type=jnp.float32)
    out_ref[...] = (y + b2_ref[...]).astype(out_ref.dtype)


def _mlp_kernel_acc(x_ref, w1_ref, b1_ref, w2_ref, b2_ref, out_ref, acc_ref):
    """Hidden dim tiled on the trailing 'arbitrary' grid axis; f32 accumulator."""
    h_idx = pl.program_id(1)

    @pl.when(h_idx == 0)
    def _init():
        acc_ref[...] = jnp.zeros_like(acc_ref)

    h = jnp.dot(x_ref[...], w1_ref[...], preferred_element_type=jnp.float32)
    h = jnp.maximum(h + b1_ref[...], 0.0)
    acc_ref[...] += jnp.dot(h.astype(w2_ref.dtype), w2_ref[...],
                            preferred_element_type=jnp.float32)

    @pl.when(h_idx == pl.num_programs(1) - 1)
    def _finalize():
        out_ref[...] = (acc_ref[...] + b2_ref[...]).astype(out_ref.dtype)


# ----------------------------- wrapper --------------------------------------


def make_safe_mlp(w1, b1, w2, b2, *, compute_dtype=jnp.bfloat16,
                  th=None, tb_target=None):
    """Prepare (cast + zero-pad) SafeMLP params once; return apply(x) -> y.

    w1: [D_in, H], b1: [H]      (transposed vs. torch.nn.Linear storage)
    w2: [H, D_out], b2: [D_out]
    apply(x: [B, D_in]) -> [B, D_out] in x.dtype.

    Zero padding is exact for this MLP: padded H columns give relu(0 + 0) = 0
    and multiply zero rows of W2; padded D_in columns multiply zero rows of W1;
    padded batch rows / D_out columns are sliced off.
    """
    d_in, hidden = w1.shape
    hidden2, d_out = w2.shape
    assert hidden2 == hidden and b1.shape == (hidden,) and b2.shape == (d_out,)

    if compute_dtype is not None:
        w1 = w1.astype(compute_dtype)
        w2 = w2.astype(compute_dtype)
    # Biases stay f32: the bias/ReLU epilogue runs in f32 (v5e VPU has no bf16).
    b1 = b1.astype(jnp.float32)
    b2 = b2.astype(jnp.float32)
    isz_w = jnp.dtype(w1.dtype).itemsize
    isz_x_est = isz_w if compute_dtype is not None else 4

    # Lane-aligned feature dims -> full-width MXU passes and lane-dense output.
    d_in_p = _round_up(d_in, 128)
    d_out_p = _round_up(d_out, 128)
    h_p = _round_up(hidden, 128)

    vmem_cap = _vmem_capacity_bytes()
    ceiling = _vmem_ceiling(vmem_cap)
    budget = ceiling - 6 * _MIB           # headroom for Mosaic internal scratch

    # Batch-tile target: bigger tiles on 128 MiB parts (v5e / v6e).
    if tb_target is None:
        tb_target = 512 if vmem_cap >= 96 * _MIB else 256

    # Hidden tile: prefer full residency (weights fetched exactly once, no
    # accumulator); otherwise the largest 128-multiple slice fitting the budget.
    if th is None:
        if _vmem_footprint(tb_target, h_p, d_in_p, d_out_p,
                           isz_x_est, isz_w, 4, with_acc=False) <= budget:
            th = h_p
        else:
            fixed = _vmem_footprint(tb_target, 0, d_in_p, d_out_p,
                                    isz_x_est, isz_w, 4, with_acc=True)
            per_h = 2 * (d_in_p + d_out_p) * isz_w + 2 * 8 * 4
            th = max(128, ((budget - fixed) // (per_h * 128)) * 128)
            th = min(th, h_p)
    assert th % 128 == 0

    h_pp = _round_up(hidden, th)          # pad H up to a multiple of th
    grid_h = h_pp // th

    # One-time (hoisted) weight / bias padding — not on the per-call path.
    w1p = jnp.pad(w1, ((0, d_in_p - d_in), (0, h_pp - hidden)))
    b1p = jnp.pad(b1, ((0, h_pp - hidden),)).reshape(1, h_pp)
    w2p = jnp.pad(w2, ((0, h_pp - hidden), (0, d_out_p - d_out)))
    b2p = jnp.pad(b2, ((0, d_out_p - d_out),)).reshape(1, d_out_p)

    def apply(x, *, tb=None):
        batch, d = x.shape
        assert d == d_in
        out_dtype = x.dtype
        if compute_dtype is not None:
            x = x.astype(compute_dtype)
        isz_x = jnp.dtype(x.dtype).itemsize
        isz_out = jnp.dtype(out_dtype).itemsize

        # Batch tile: multiple of 8; keep the tile count even when >= 2 so
        # v7x's two TensorCores split the "parallel" axis evenly.
        if tb is None:
            n_tiles = pl.cdiv(batch, tb_target)
            if n_tiles >= 2 and n_tiles % 2 == 1:
                n_tiles += 1
            tb = _round_up(pl.cdiv(batch, n_tiles), 8)
        assert tb % 8 == 0
        b_p = _round_up(batch, tb)
        nb = b_p // tb

        # Pad x only when it is not a no-op (avoids an extra HBM copy).
        if b_p != batch or d_in_p != d_in:
            xp = jnp.pad(x, ((0, b_p - batch), (0, d_in_p - d_in)))
        else:
            xp = x

        est = _vmem_footprint(tb, th, d_in_p, d_out_p, isz_x, isz_w, isz_out,
                              with_acc=(grid_h > 1))
        vmem_limit = int(min(ceiling, max(32 * _MIB, est + 4 * _MIB)))

        cost = pl.CostEstimate(
            flops=2 * b_p * (d_in_p * h_pp + h_pp * d_out_p),
            transcendentals=0,
            bytes_accessed=(b_p * d_in_p * isz_x + d_in_p * h_pp * isz_w
                            + h_pp * 4 + h_pp * d_out_p * isz_w + d_out_p * 4
                            + b_p * d_out_p * isz_out))

        if grid_h == 1:
            grid = (nb,)
            in_specs = [
                pl.BlockSpec((tb, d_in_p), lambda i: (i, 0)),      # x tile
                pl.BlockSpec((d_in_p, h_pp), lambda i: (0, 0)),    # W1 (resident)
                pl.BlockSpec((1, h_pp), lambda i: (0, 0)),         # b1
                pl.BlockSpec((h_pp, d_out_p), lambda i: (0, 0)),   # W2 (resident)
                pl.BlockSpec((1, d_out_p), lambda i: (0, 0)),      # b2
            ]
            out_specs = pl.BlockSpec((tb, d_out_p), lambda i: (i, 0))
            kernel, scratch = _mlp_kernel_single, []
            dims = ("parallel",)
        else:
            grid = (nb, grid_h)
            in_specs = [
                pl.BlockSpec((tb, d_in_p), lambda i, h: (i, 0)),   # x tile
                pl.BlockSpec((d_in_p, th), lambda i, h: (0, h)),   # W1 H-slice
                pl.BlockSpec((1, th), lambda i, h: (0, h)),        # b1 H-slice
                pl.BlockSpec((th, d_out_p), lambda i, h: (h, 0)),  # W2 H-slice
                pl.BlockSpec((1, d_out_p), lambda i, h: (0, 0)),   # b2
            ]
            out_specs = pl.BlockSpec((tb, d_out_p), lambda i, h: (i, 0))
            kernel = _mlp_kernel_acc
            scratch = [pltpu.VMEM((tb, d_out_p), jnp.float32)]
            dims = ("parallel", "arbitrary")

        out_p = pl.pallas_call(
            kernel,
            out_shape=jax.ShapeDtypeStruct((b_p, d_out_p), out_dtype),
            grid_spec=pltpu.PrefetchScalarGridSpec(
                num_scalar_prefetch=0,
                grid=grid,
                in_specs=in_specs,
                out_specs=out_specs,
                scratch_shapes=scratch,
            ),
            compiler_params=pltpu.CompilerParams(
                dimension_semantics=dims,
                vmem_limit_bytes=vmem_limit,
            ),
            cost_estimate=cost,
        )(xp, w1p, b1p, w2p, b2p)

        if b_p != batch or d_out_p != d_out:
            out_p = out_p[:batch, :d_out]
        return out_p

    return apply


def safe_mlp(x, w1, b1, w2, b2, *, compute_dtype=jnp.bfloat16, tb=None, th=None):
    """One-shot convenience wrapper. Prefer make_safe_mlp() to hoist the
    parameter padding / cast out of the per-call path."""
    return make_safe_mlp(w1, b1, w2, b2, compute_dtype=compute_dtype, th=th)(x, tb=tb)


def _ref_mlp(x, w1, b1, w2, b2):
    return jnp.maximum(x @ w1 + b1, 0.0) @ w2 + b2


if __name__ == "__main__":
    key = jax.random.PRNGKey(0)

    def make_case(key, batch, input_dim, hidden_dim, output_dim):
        kx, kw1, kb1, kw2, kb2 = jax.random.split(key, 5)
        x = jax.random.normal(kx, (batch, input_dim), dtype=jnp.float32)
        bound1 = 1.0 / (input_dim ** 0.5)
        w1 = jax.random.uniform(kw1, (input_dim, hidden_dim), jnp.float32,
                                minval=-bound1, maxval=bound1)
        b1 = jax.random.uniform(kb1, (hidden_dim,), jnp.float32,
                                minval=-bound1, maxval=bound1)
        bound2 = 1.0 / (hidden_dim ** 0.5)
        w2 = jax.random.uniform(kw2, (hidden_dim, output_dim), jnp.float32,
                                minval=-bound2, maxval=bound2)
        b2 = jax.random.uniform(kb2, (output_dim,), jnp.float32,
                                minval=-bound2, maxval=bound2)
        return x, w1, b1, w2, b2

    k1, k2 = jax.random.split(key)

    # Case 1: small shapes matching the original SafeMLP usage.
    x, w1, b1, w2, b2 = make_case(k1, batch=8, input_dim=32,
                                  hidden_dim=64, output_dim=16)
    ref = _ref_mlp(x, w1, b1, w2, b2)

    # f32 compute path: exact check (single-step resident-weight kernel).
    out = safe_mlp(x, w1, b1, w2, b2, compute_dtype=jnp.float32)
    jax.block_until_ready(out)
    assert out.shape == (8, 16) and out.dtype == x.dtype
    assert jnp.allclose(out, ref, atol=1e-5, rtol=1e-5)

    # Default bf16 MXU operands (f32 accumulation), padding hoisted via factory.
    mlp = make_safe_mlp(w1, b1, w2, b2)
    out_bf16 = mlp(x)
    jax.block_until_ready(out_bf16)
    assert out_bf16.shape == (8, 16)
    assert jnp.allclose(out_bf16, ref, atol=5e-2, rtol=5e-2)

    # Case 2: ragged dims exercising zero padding, multiple batch tiles and the
    # hidden-tiled accumulator path (tb=8, th=128 on H=200 -> grid (3, 2)).
    x, w1, b1, w2, b2 = make_case(k2, batch=20, input_dim=50,
                                  hidden_dim=200, output_dim=10)
    ref = _ref_mlp(x, w1, b1, w2, b2)

    out = safe_mlp(x, w1, b1, w2, b2, compute_dtype=jnp.float32, tb=8, th=128)
    jax.block_until_ready(out)
    assert out.shape == (20, 10)
    assert jnp.allclose(out, ref, atol=1e-5, rtol=1e-5)

    # Same ragged case through the default (resident-weight, bf16) fast path.
    out_fast = make_safe_mlp(w1, b1, w2, b2)(x)
    jax.block_until_ready(out_fast)
    assert out_fast.shape == (20, 10)
    assert jnp.allclose(out_fast, ref, atol=5e-2, rtol=5e-2)

    print("KERNEL_OK")
</pallas_src>

<mosaic_0001>
module attributes {stable_mosaic.version = 11 : i64} {
  func.func @_mlp_kernel_single(%arg0: i32, %arg1: memref<8x128xf32, #tpu.memory_space<vmem>>, %arg2: memref<128x128xf32, #tpu.memory_space<vmem>>, %arg3: memref<1x128xf32, #tpu.memory_space<vmem>>, %arg4: memref<128x128xf32, #tpu.memory_space<vmem>>, %arg5: memref<1x128xf32, #tpu.memory_space<vmem>>, %arg6: memref<8x128xf32, #tpu.memory_space<vmem>>) attributes {dimension_semantics = [#tpu.dimension_semantics<parallel>], iteration_bounds = array<i64: 1>, scalar_prefetch = 0 : i64, scratch_operands = 0 : i64, tpu.core_type = #tpu.core_type<tc>, window_params = [{transform_indices = @transform_0, window_bounds = array<i64: 8, 128>}, {pipeline_mode = #tpu.pipeline_mode<synchronous>, transform_indices = @transform_1, window_bounds = array<i64: 128, 128>}, {pipeline_mode = #tpu.pipeline_mode<synchronous>, transform_indices = @transform_2, window_bounds = array<i64: 1, 128>}, {pipeline_mode = #tpu.pipeline_mode<synchronous>, transform_indices = @transform_3, window_bounds = array<i64: 128, 128>}, {pipeline_mode = #tpu.pipeline_mode<synchronous>, transform_indices = @transform_4, window_bounds = array<i64: 1, 128>}, {transform_indices = @transform_5, window_bounds = array<i64: 8, 128>}]} {
    %c0 = arith.constant 0 : index
    %c0_0 = arith.constant 0 : index
    %0 = vector.load %arg1[%c0, %c0_0] : memref<8x128xf32, #tpu.memory_space<vmem>>, vector<8x128xf32>
    %c0_1 = arith.constant 0 : index
    %c0_2 = arith.constant 0 : index
    %1 = vector.load %arg2[%c0_1, %c0_2] : memref<128x128xf32, #tpu.memory_space<vmem>>, vector<128x128xf32>
    %cst = arith.constant dense<0.000000e+00> : vector<8x128xf32>
    %2 = tpu.matmul %0, %1, %cst {dimension_numbers = #tpu.dot_dimension_numbers<[1], [0], [0], [1], [0, 0, 1, 1], [], []>} : vector<8x128xf32>, vector<128x128xf32>, vector<8x128xf32> -> vector<8x128xf32>
    %c0_3 = arith.constant 0 : index
    %c0_4 = arith.constant 0 : index
    %3 = vector.load %arg3[%c0_3, %c0_4] : memref<1x128xf32, #tpu.memory_space<vmem>>, vector<1x128xf32>
    %4 = vector.broadcast %3 : vector<1x128xf32> to vector<8x128xf32>
    %5 = arith.addf %2, %4 : vector<8x128xf32>
    %cst_5 = arith.constant 0.000000e+00 : f32
    %6 = vector.broadcast %cst_5 : f32 to vector<8x128xf32>
    %7 = arith.maximumf %5, %6 : vector<8x128xf32>
    %c0_6 = arith.constant 0 : index
    %c0_7 = arith.constant 0 : index
    %8 = vector.load %arg4[%c0_6, %c0_7] : memref<128x128xf32, #tpu.memory_space<vmem>>, vector<128x128xf32>
    %cst_8 = arith.constant dense<0.000000e+00> : vector<8x128xf32>
    %9 = tpu.matmul %7, %8, %cst_8 {dimension_numbers = #tpu.dot_dimension_numbers<[1], [0], [0], [1], [0, 0, 1, 1], [], []>} : vector<8x128xf32>, vector<128x128xf32>, vector<8x128xf32> -> vector<8x128xf32>
    %c0_9 = arith.constant 0 : index
    %c0_10 = arith.constant 0 : index
    %10 = vector.load %arg5[%c0_9, %c0_10] : memref<1x128xf32, #tpu.memory_space<vmem>>, vector<1x128xf32>
    %11 = vector.broadcast %10 : vector<1x128xf32> to vector<8x128xf32>
    %12 = arith.addf %9, %11 : vector<8x128xf32>
    %c0_11 = arith.constant 0 : index
    %c0_12 = arith.constant 0 : index
    %13 = vector.load %arg6[%c0_11, %c0_12] : memref<8x128xf32, #tpu.memory_space<vmem>>, vector<8x128xf32>
    tpu.vector_store %arg6[%c0_11, %c0_12], %12 {strides = array<i32>} : memref<8x128xf32, #tpu.memory_space<vmem>>, vector<8x128xf32>,
    return
  }
  func.func @transform_0(%arg0: i32) -> (i32, i32) {
    %c0_i32 = arith.constant 0 : i32
    %c0_i32_0 = arith.constant 0 : i32
    return %arg0, %c0_i32 : i32, i32
  }
  func.func @transform_1(%arg0: i32) -> (i32, i32) {
    %c0_i32 = arith.constant 0 : i32
    %c0_i32_0 = arith.constant 0 : i32
    %c0_i32_1 = arith.constant 0 : i32
    return %c0_i32, %c0_i32_0 : i32, i32
  }
  func.func @transform_2(%arg0: i32) -> (i32, i32) {
    %c0_i32 = arith.constant 0 : i32
    %c0_i32_0 = arith.constant 0 : i32
    %c0_i32_1 = arith.constant 0 : i32
    return %c0_i32, %c0_i32_0 : i32, i32
  }
  func.func @transform_3(%arg0: i32) -> (i32, i32) {
    %c0_i32 = arith.constant 0 : i32
    %c0_i32_0 = arith.constant 0 : i32
    %c0_i32_1 = arith.constant 0 : i32
    return %c0_i32, %c0_i32_0 : i32, i32
  }
  func.func @transform_4(%arg0: i32) -> (i32, i32) {
    %c0_i32 = arith.constant 0 : i32
    %c0_i32_0 = arith.constant 0 : i32
    %c0_i32_1 = arith.constant 0 : i32
    return %c0_i32, %c0_i32_0 : i32, i32
  }
  func.func @transform_5(%arg0: i32) -> (i32, i32) {
    %c0_i32 = arith.constant 0 : i32
    %c0_i32_0 = arith.constant 0 : i32
    return %arg0, %c0_i32 : i32, i32
  }
}

</mosaic_0001>

<llo_original>
// kernel: tpu_custom_call.1
$region0: #{tpu_custom_call.1}
  #allocation0 [shape = 'u32[]', space=smem, size = 0x4, offset = 0x4, fixed_abs, tag = 'smem constant byte address 0x4 - core index']
  #allocation1 [shape = 'u32[72,128]{1,0:T(1,128)}', space=vmem, size = 0x9000, scoped, tag = 'internal scratch']
  %s0 = inlined_call_operand.hbm [shape: f32[8,128], index: 0, kind: input, shape index: {}]
  %s1 = inlined_call_operand.hbm [shape: f32[128,128], index: 1, kind: input, shape index: {}]
  %s2 = inlined_call_operand.vmem [shape: f32[1,128], index: 2, kind: input, shape index: {}]
  %s3 = inlined_call_operand.hbm [shape: f32[128,128], index: 3, kind: input, shape index: {}]
  %s4 = inlined_call_operand.vmem [shape: f32[1,128], index: 4, kind: input, shape index: {}]
  %s5 = inlined_call_operand.hbm [shape: f32[8,128], index: 5, kind: output, shape index: {}]
  %s6 = sld [smem:[#allocation0]]
  $region42: #{tpu_custom_call.1} parent=0
    _
  %s8 = ssub.s32 1, %s6
  %s9 = scalar_select 0, %s8, %s6
  $region1: #{tpu_custom_call.1} parent=0
    #allocation2 [shape = 'u8[4096]{0}', space=vmem, size = 0x1000, scoped, tag = 'input window, operand 0, single buffered']
    #allocation3 [shape = 's32[1]{0}', space=sflag, size = 0x4, scoped, tag = 'scoped memory for tpu_custom_call.1']
    #allocation4 [shape = 's32[1]{0}', space=sflag, size = 0x4, scoped, tag = 'scoped memory for tpu_custom_call.1']
    #allocation5 [shape = 'u8[65536]{0}', space=vmem, size = 0x10000, scoped, tag = 'input window, operand 1, single buffered']
    #allocation6 [shape = 's32[1]{0}', space=sflag, size = 0x4, scoped, tag = 'scoped memory for tpu_custom_call.1']
    #allocation7 [shape = 'u8[65536]{0}', space=vmem, size = 0x10000, scoped, tag = 'input window, operand 3, single buffered']
    #allocation8 [shape = 'u8[4096]{0}', space=vmem, size = 0x1000, scoped, tag = 'output window, operand 0, single buffered']
    %10 = vsyncpa [#allocation3], 0
    %11 = vsyncpa [#allocation6], 0
    %12 = vsyncpa [#allocation4], 0
    // Predicated region
    $region2: #{tpu_custom_call.1} parent=1 // pred_check
      _
    $region3: #{tpu_custom_call.1} parent=1 // pred_check_branch
      %14 = sbr.rel (0) target = $region5
    $region4: #{tpu_custom_call.1} parent=1 // pred_region
      %16 = vsyncadd [#allocation3], 0
      %s18 = sshll.u32 %s0, 4
      %s19 = int_to_ptr.hbm [resolvable:$true] %s18
      %s20 = sshll.u32 [#allocation2], 4
      %s21 = int_to_ptr.vmem [resolvable:$true] %s20
      %23 = dma.hbm_to_vmem [thread:$0]  %s19, 128, %s21, [#allocation3]
    $region5: #{tpu_custom_call.1} parent=1 // pred_fallthru
      _
    // Predicated region
    $region6: #{tpu_custom_call.1} parent=1 // pred_check
      _
    $region7: #{tpu_custom_call.1} parent=1 // pred_check_branch
      %25 = sbr.rel (0) target = $region9
    $region8: #{tpu_custom_call.1} parent=1 // pred_region
      %27 = vsyncadd [#allocation6], 0
      %s28 = sshll.u32 %s1, 4
      %s29 = int_to_ptr.hbm [resolvable:$true] %s28
      %s30 = sshll.u32 [#allocation5], 4
      %s31 = int_to_ptr.vmem [resolvable:$true] %s30
      %36 = dma.hbm_to_vmem [thread:$0]  %s29, 2048, %s31, [#allocation6], 128, 128, 8
    $region9: #{tpu_custom_call.1} parent=1 // pred_fallthru
      _
    // Predicated region
    $region10: #{tpu_custom_call.1} parent=1 // pred_check
      _
    $region11: #{tpu_custom_call.1} parent=1 // pred_check_branch
      %38 = sbr.rel (0) target = $region13
    $region12: #{tpu_custom_call.1} parent=1 // pred_region
      _
    $region13: #{tpu_custom_call.1} parent=1 // pred_fallthru
      _
    // Predicated region
    $region14: #{tpu_custom_call.1} parent=1 // pred_check
      _
    $region15: #{tpu_custom_call.1} parent=1 // pred_check_branch
      %40 = sbr.rel (0) target = $region17
    $region16: #{tpu_custom_call.1} parent=1 // pred_region
      %42 = vsyncadd [#allocation6], 0
      %s43 = sshll.u32 %s3, 4
      %s44 = int_to_ptr.hbm [resolvable:$true] %s43
      %s45 = sshll.u32 [#allocation7], 4
      %s46 = int_to_ptr.vmem [resolvable:$true] %s45
      %51 = dma.hbm_to_vmem [thread:$0]  %s44, 2048, %s46, [#allocation6], 128, 128, 8
    $region17: #{tpu_custom_call.1} parent=1 // pred_fallthru
      _
    // Predicated region
    $region18: #{tpu_custom_call.1} parent=1 // pred_check
      _
    $region19: #{tpu_custom_call.1} parent=1 // pred_check_branch
      %53 = sbr.rel (0) target = $region21
    $region20: #{tpu_custom_call.1} parent=1 // pred_region
      _
    $region21: #{tpu_custom_call.1} parent=1 // pred_fallthru
      _
    // Predicated region
    $region22: #{tpu_custom_call.1} parent=1 // pred_check
      _
    $region23: #{tpu_custom_call.1} parent=1 // pred_check_branch
      %55 = sbr.rel (0) target = $region25
    $region24: #{tpu_custom_call.1} parent=1 // pred_region
      %57 = dma.done [#allocation3], 128
    $region25: #{tpu_custom_call.1} parent=1 // pred_fallthru
      _
    // Predicated region
    $region26: #{tpu_custom_call.1} parent=1 // pred_check
      _
    $region27: #{tpu_custom_call.1} parent=1 // pred_check_branch
      %59 = sbr.rel (0) target = $region29
    $region28: #{tpu_custom_call.1} parent=1 // pred_region
      %61 = dma.done [#allocation6], 2048
    $region29: #{tpu_custom_call.1} parent=1 // pred_fallthru
      _
    // Predicated region
    $region30: #{tpu_custom_call.1} parent=1 // pred_check
      _
    $region31: #{tpu_custom_call.1} parent=1 // pred_check_branch
      %63 = sbr.rel (0) target = $region33
    $region32: #{tpu_custom_call.1} parent=1 // pred_region
      %65 = dma.done [#allocation6], 2048
    $region33: #{tpu_custom_call.1} parent=1 // pred_fallthru
      _
    %v66 = vld [vmem:[#allocation2] sm:$0xff]
    %v67 = vld [vmem:[#allocation5] sm:$0xff]
    %v68 = vld [vmem:[#allocation5 + $0x8] sm:$0xff]
    %v69 = vld [vmem:[#allocation5 + $0x10] sm:$0xff]
    %v70 = vld [vmem:[#allocation5 + $0x18] sm:$0xff]
    %v71 = vld [vmem:[#allocation5 + $0x20] sm:$0xff]
    %v72 = vld [vmem:[#allocation5 + $0x28] sm:$0xff]
    %v73 = vld [vmem:[#allocation5 + $0x30] sm:$0xff]
    %v74 = vld [vmem:[#allocation5 + $0x38] sm:$0xff]
    %v75 = vld [vmem:[#allocation5 + $0x40] sm:$0xff]
    %v76 = vld [vmem:[#allocation5 + $0x48] sm:$0xff]
    %v77 = vld [vmem:[#allocation5 + $0x50] sm:$0xff]
    %v78 = vld [vmem:[#allocation5 + $0x58] sm:$0xff]
    %v79 = vld [vmem:[#allocation5 + $0x60] sm:$0xff]
    %v80 = vld [vmem:[#allocation5 + $0x68] sm:$0xff]
    %v81 = vld [vmem:[#allocation5 + $0x70] sm:$0xff]
    %v82 = vld [vmem:[#allocation5 + $0x78] sm:$0xff]
    %v83 = vld [vmem:[%s2] sm:$0x1]
    %v85 = vperm.slane %v83, 0
    %87 = vmatpush.msra.mxu0 %v82
    %88 = vmatpush.msra.mxu0 %v81
    %89 = vmatpush.msra.mxu0 %v80
    %90 = vmatpush.msra.mxu0 %v79
    %91 = vmatpush.msra.mxu0 %v78
    %92 = vmatpush.msra.mxu0 %v77
    %93 = vmatpush.msra.mxu0 %v76
    %94 = vmatpush.msra.mxu0 %v75
    %95 = vmatpush.msra.mxu0 %v74
    %96 = vmatpush.msra.mxu0 %v73
    %97 = vmatpush.msra.mxu0 %v72
    %98 = vmatpush.msra.mxu0 %v71
    %99 = vmatpush.msra.mxu0 %v70
    %100 = vmatpush.msra.mxu0 %v69
    %101 = vmatpush.msra.mxu0 %v68
    %102 = vmatpush.msra.mxu0 %v67
    %103 = vmatmul.f32.gmra.mxu0 %v66
    %v104 = vpop.f32.mrf.mxu0
    %v105 = vadd.f32 %v85, %v104
    %106 = vdwg.mxu0
    %v107 = vmax.f32 %v105, 0.0
    %v108 = vld [vmem:[#allocation7] sm:$0xff]
    %v109 = vld [vmem:[#allocation7 + $0x8] sm:$0xff]
    %v110 = vld [vmem:[#allocation7 + $0x10] sm:$0xff]
    %v111 = vld [vmem:[#allocation7 + $0x18] sm:$0xff]
    %v112 = vld [vmem:[#allocation7 + $0x20] sm:$0xff]
    %v113 = vld [vmem:[#allocation7 + $0x28] sm:$0xff]
    %v114 = vld [vmem:[#allocation7 + $0x30] sm:$0xff]
    %v115 = vld [vmem:[#allocation7 + $0x38] sm:$0xff]
    %v116 = vld [vmem:[#allocation7 + $0x40] sm:$0xff]
    %v117 = vld [vmem:[#allocation7 + $0x48] sm:$0xff]
    %v118 = vld [vmem:[#allocation7 + $0x50] sm:$0xff]
    %v119 = vld [vmem:[#allocation7 + $0x58] sm:$0xff]
    %v120 = vld [vmem:[#allocation7 + $0x60] sm:$0xff]
    %v121 = vld [vmem:[#allocation7 + $0x68] sm:$0xff]
    %v122 = vld [vmem:[#allocation7 + $0x70] sm:$0xff]
    %v123 = vld [vmem:[#allocation7 + $0x78] sm:$0xff]
    %v124 = vld [vmem:[%s4] sm:$0x1]
    %v126 = vperm.slane %v124, 0
    %128 = vmatpush.msra.mxu0 %v123
    %129 = vmatpush.msra.mxu0 %v122
    %130 = vmatpush.msra.mxu0 %v121
    %131 = vmatpush.msra.mxu0 %v120
    %132 = vmatpush.msra.mxu0 %v119
    %133 = vmatpush.msra.mxu0 %v118
    %134 = vmatpush.msra.mxu0 %v117
    %135 = vmatpush.msra.mxu0 %v116
    %136 = vmatpush.msra.mxu0 %v115
    %137 = vmatpush.msra.mxu0 %v114
    %138 = vmatpush.msra.mxu0 %v113
    %139 = vmatpush.msra.mxu0 %v112
    %140 = vmatpush.msra.mxu0 %v111
    %141 = vmatpush.msra.mxu0 %v110
    %142 = vmatpush.msra.mxu0 %v109
    %143 = vmatpush.msra.mxu0 %v108
    %144 = vmatmul.f32.gmra.mxu0 %v107
    %v145 = vpop.f32.mrf.mxu0
    %v146 = vadd.f32 %v126, %v145
    %147 = vdwg.mxu0
    %148 = vst [vmem:[#allocation8] sm:$0xff] %v146
    // Predicated region
    $region34: #{tpu_custom_call.1} parent=1 // pred_check
      _
    $region35: #{tpu_custom_call.1} parent=1 // pred_check_branch
      %150 = sbr.rel (0) target = $region37
    $region36: #{tpu_custom_call.1} parent=1 // pred_region
      %152 = vsyncadd [#allocation4], 0
      %s154 = sshll.u32 [#allocation8], 4
      %s155 = int_to_ptr.vmem [resolvable:$true] %s154
      %s156 = sshll.u32 %s5, 4
      %s157 = int_to_ptr.hbm [resolvable:$true] %s156
      %159 = dma.vmem_to_hbm [thread:$0]  %s155, 128, %s157, [#allocation4]
    $region37: #{tpu_custom_call.1} parent=1 // pred_fallthru
      _
    // Predicated region
    $region38: #{tpu_custom_call.1} parent=1 // pred_check
      _
    $region39: #{tpu_custom_call.1} parent=1 // pred_check_branch
      %161 = sbr.rel (0) target = $region41
    $region40: #{tpu_custom_call.1} parent=1 // pred_region
      %163 = dma.done [#allocation4], 128
    $region41: #{tpu_custom_call.1} parent=1 // pred_fallthru
      _
    %164 = vsyncpa [#allocation3], 1
    %165 = vsyncpa [#allocation6], 1
    %166 = vsyncpa [#allocation4], 1

</llo_original>
